<compile_context>
chip_gen: v5e
topology: v5e:2x2
jax: 0.10.0
libtpu: 0.0.40
codegen_flags: <defaults>
</compile_context>

<pallas_src>
import jax
import jax.numpy as jnp
from jax import lax
from jax.experimental import pallas as pl
from jax.experimental.pallas import tpu as pltpu


def _pick_l_tile(L, max_tile=512):
    """Largest multiple-of-128 divisor of L up to max_tile, else full L."""
    if L % 128 == 0:
        t = min(max_tile, L)
        while t >= 128:
            if L % t == 0:
                return t
            t -= 128
    return L


def _onehot_matmul_kernel(u_ref, w_ref, o_ref):
    # u_ref : (1, 1, TL) int32   token ids of the current (batch, L-tile)
    # w_ref : (P, H)     float32 full weight, resident across grid steps
    # o_ref : (1, P, TL) float32
    H = w_ref.shape[1]
    TL = u_ref.shape[-1]

    ids = u_ref[0]                                          # (1, TL), lanes = L
    classes = lax.broadcasted_iota(jnp.int32, (H, TL), 0)   # (H, TL), class on sublanes
    one_hot = (ids == classes).astype(jnp.float32)          # (H, TL)

    # MXU: (P, H) @ (H, TL) -> (P, TL); the permute(0, 2, 1) is fused here.
    o_ref[0] = jnp.dot(w_ref[...], one_hot,
                       preferred_element_type=jnp.float32).astype(o_ref.dtype)


def _dense_matmul_kernel(x_ref, w_ref, o_ref):
    # x_ref : (1, H, TL) float32 (already in 'bhl' layout)
    # w_ref : (P, H)     float32
    # o_ref : (1, P, TL) float32
    o_ref[0] = jnp.dot(w_ref[...], x_ref[0],
                       preferred_element_type=jnp.float32).astype(o_ref.dtype)


def encoder_forward(x, w_in, one_hot):
    """Pallas forward of Encoder: einsum('ph,bhl->bpl', w_in, enc(x)) -> (B, P, L)."""
    P, H = w_in.shape
    w_in = w_in.astype(jnp.float32)

    if one_hot:
        B, L = x.shape
        TL = _pick_l_tile(L)
        # (B, 1, L) keeps the token row on the lane axis; the sublane block dim
        # (=1) equals the full array dim, so tiling is legal for any L.
        u3 = x.reshape(B, 1, L).astype(jnp.int32)
        return pl.pallas_call(
            _onehot_matmul_kernel,
            out_shape=jax.ShapeDtypeStruct((B, P, L), jnp.float32),
            grid=(B, L // TL),
            in_specs=[
                pl.BlockSpec((1, 1, TL), lambda b, lt: (b, 0, lt)),  # ids tile
                pl.BlockSpec((P, H), lambda b, lt: (0, 0)),          # full weight
            ],
            out_specs=pl.BlockSpec((1, P, TL), lambda b, lt: (b, 0, lt)),
            compiler_params=pltpu.CompilerParams(
                dimension_semantics=("parallel", "parallel")),
        )(u3, w_in)

    # one_hot == False: x is already (B, H, L) float.
    B, H2, L = x.shape
    assert H2 == H, (H2, H)
    TL = _pick_l_tile(L)
    return pl.pallas_call(
        _dense_matmul_kernel,
        out_shape=jax.ShapeDtypeStruct((B, P, L), jnp.float32),
        grid=(B, L // TL),
        in_specs=[
            pl.BlockSpec((1, H, TL), lambda b, lt: (b, 0, lt)),
            pl.BlockSpec((P, H), lambda b, lt: (0, 0)),
        ],
        out_specs=pl.BlockSpec((1, P, TL), lambda b, lt: (b, 0, lt)),
        compiler_params=pltpu.CompilerParams(
            dimension_semantics=("parallel", "parallel")),
    )(x.astype(jnp.float32), w_in)


if __name__ == "__main__":
    # Small demo shapes, lane/sublane friendly:
    #   L a multiple of 128 (lane-dense output stores), P and H multiples of 8.
    B, L = 2, 128          # batch, sequence length
    H = 32                 # num_classes / input dim (w_in.shape[-1])
    P = 16                 # output dim (w_in.shape[0])

    key = jax.random.PRNGKey(0)
    k_w, k_u, k_x = jax.random.split(key, 3)

    w_in = jax.random.normal(k_w, (P, H), jnp.float32)

    # ---- one_hot = True path ----------------------------------------------
    u = jax.random.randint(k_u, (B, L), 0, H, dtype=jnp.int32)
    out_oh = jax.block_until_ready(encoder_forward(u, w_in, one_hot=True))

    oh = jax.nn.one_hot(u, H, dtype=jnp.float32)                 # (B, L, H)
    oh = jnp.transpose(oh, (0, 2, 1))                            # (B, H, L)
    ref_oh = jnp.einsum("ph,bhl->bpl", w_in, oh)                 # (B, P, L)

    assert out_oh.shape == (B, P, L), out_oh.shape
    assert jnp.allclose(out_oh, ref_oh, atol=1e-4, rtol=1e-4), \
        "one-hot path mismatch vs reference"

    # ---- one_hot = False path ---------------------------------------------
    x_dense = jax.random.normal(k_x, (B, H, L), jnp.float32)
    out_d = jax.block_until_ready(encoder_forward(x_dense, w_in, one_hot=False))
    ref_d = jnp.einsum("ph,bhl->bpl", w_in, x_dense)

    assert out_d.shape == (B, P, L), out_d.shape
    # slightly looser tolerance: MXU f32 pass ordering may differ from XLA einsum
    assert jnp.allclose(out_d, ref_d, atol=2e-2, rtol=2e-2), \
        "dense path mismatch vs reference"

    print("KERNEL_OK")
</pallas_src>

<mosaic_0001>
module attributes {stable_mosaic.version = 11 : i64} {
  func.func @_onehot_matmul_kernel(%arg0: i32, %arg1: i32, %arg2: memref<1x1x128xi32, #tpu.memory_space<vmem>>, %arg3: memref<16x32xf32, #tpu.memory_space<vmem>>, %arg4: memref<1x16x128xf32, #tpu.memory_space<vmem>>) attributes {dimension_semantics = [#tpu.dimension_semantics<parallel>, #tpu.dimension_semantics<parallel>], iteration_bounds = array<i64: 2, 1>, scalar_prefetch = 0 : i64, scratch_operands = 0 : i64, tpu.core_type = #tpu.core_type<tc>, window_params = [{transform_indices = @transform_0, window_bounds = array<i64: 1, 1, 128>}, {pipeline_mode = #tpu.pipeline_mode<synchronous>, transform_indices = @transform_1, window_bounds = array<i64: 16, 32>}, {transform_indices = @transform_2, window_bounds = array<i64: 1, 16, 128>}]} {
    %c0 = arith.constant 0 : index
    %c0_0 = arith.constant 0 : index
    %c0_1 = arith.constant 0 : index
    %0 = vector.load %arg2[%c0, %c0_0, %c0_1] : memref<1x1x128xi32, #tpu.memory_space<vmem>>, vector<1x1x128xi32>
    %1 = vector.shape_cast %0 : vector<1x1x128xi32> to vector<1x128xi32>
    %2 = tpu.iota {dimensions = array<i32: 0>} : vector<32x128xi32>
    %3 = vector.broadcast %1 : vector<1x128xi32> to vector<32x128xi32>
    %4 = arith.cmpi eq, %3, %2 : vector<32x128xi32>
    %5 = arith.extui %4 : vector<32x128xi1> to vector<32x128xi32>
    %6 = arith.sitofp %5 : vector<32x128xi32> to vector<32x128xf32>
    %c0_2 = arith.constant 0 : index
    %c0_3 = arith.constant 0 : index
    %7 = vector.load %arg3[%c0_2, %c0_3] : memref<16x32xf32, #tpu.memory_space<vmem>>, vector<16x32xf32>
    %cst = arith.constant dense<0.000000e+00> : vector<16x128xf32>
    %8 = tpu.matmul %7, %6, %cst {dimension_numbers = #tpu.dot_dimension_numbers<[1], [0], [0], [1], [0, 0, 1, 1], [], []>} : vector<16x32xf32>, vector<32x128xf32>, vector<16x128xf32> -> vector<16x128xf32>
    %c0_4 = arith.constant 0 : index
    %c0_5 = arith.constant 0 : index
    %c0_6 = arith.constant 0 : index
    %9 = vector.load %arg4[%c0_4, %c0_5, %c0_6] : memref<1x16x128xf32, #tpu.memory_space<vmem>>, vector<1x16x128xf32>
    %10 = vector.shape_cast %9 : vector<1x16x128xf32> to vector<16x128xf32>
    %11 = vector.shape_cast %8 : vector<16x128xf32> to vector<1x16x128xf32>
    tpu.vector_store %arg4[%c0_4, %c0_5, %c0_6], %11 {strides = array<i32>} : memref<1x16x128xf32, #tpu.memory_space<vmem>>, vector<1x16x128xf32>,
    return
  }
  func.func @transform_0(%arg0: i32, %arg1: i32) -> (i32, i32, i32) {
    %c0_i32 = arith.constant 0 : i32
    %c0_i32_0 = arith.constant 0 : i32
    return %arg0, %c0_i32, %arg1 : i32, i32, i32
  }
  func.func @transform_1(%arg0: i32, %arg1: i32) -> (i32, i32) {
    %c0_i32 = arith.constant 0 : i32
    %c0_i32_0 = arith.constant 0 : i32
    %c0_i32_1 = arith.constant 0 : i32
    return %c0_i32, %c0_i32_0 : i32, i32
  }
  func.func @transform_2(%arg0: i32, %arg1: i32) -> (i32, i32, i32) {
    %c0_i32 = arith.constant 0 : i32
    %c0_i32_0 = arith.constant 0 : i32
    return %arg0, %c0_i32, %arg1 : i32, i32, i32
  }
}

</mosaic_0001>

<llo_original>
// kernel: tpu_custom_call.1
$region0: #{tpu_custom_call.1}
  #allocation0 [shape = 'u32[]', space=smem, size = 0x4, offset = 0x4, fixed_abs, tag = 'smem constant byte address 0x4 - core index']
  #allocation1 [shape = 'u32[72,128]{1,0:T(1,128)}', space=vmem, size = 0x9000, scoped, tag = 'internal scratch']
  %s0 = inlined_call_operand.hbm [shape: s32[2,1,128], index: 0, kind: input, shape index: {}]
  %s1 = inlined_call_operand.hbm [shape: f32[16,32], index: 1, kind: input, shape index: {}]
  %s2 = inlined_call_operand.hbm [shape: f32[2,16,128], index: 2, kind: output, shape index: {}]
  %s3 = sld [smem:[#allocation0]]
  $region49: #{tpu_custom_call.1} parent=0
    _
  %s5 = ssub.s32 1, %s3
  %s6 = scalar_select 0, %s5, %s3
  $region1: #{tpu_custom_call.1} parent=0
    #allocation2 [shape = 'u8[1024]{0}', space=vmem, size = 0x400, scoped, tag = 'input window, operand 0']
    #allocation3 [shape = 's32[2]{0}', space=sflag, size = 0x8, scoped, tag = 'scoped memory for tpu_custom_call.1']
    #allocation4 [shape = 's32[2]{0}', space=sflag, size = 0x8, scoped, tag = 'scoped memory for tpu_custom_call.1']
    #allocation5 [shape = 'u8[8192]{0}', space=vmem, size = 0x2000, scoped, tag = 'input window, operand 1, single buffered']
    #allocation6 [shape = 's32[1]{0}', space=sflag, size = 0x4, scoped, tag = 'scoped memory for tpu_custom_call.1']
    #allocation7 [shape = 'u8[16384]{0}', space=vmem, size = 0x4000, scoped, tag = 'output window, operand 0']
    %7 = vsyncpa [#allocation3], 0
    %s8 = scalar_lea.sflag [#allocation3], 1
    %9 = vsyncpa %s8, 0
    %10 = vsyncpa [#allocation6], 0
    %11 = vsyncpa [#allocation4], 0
    %s12 = scalar_lea.sflag [#allocation4], 1
    %13 = vsyncpa %s12, 0
    loop: start=0, step=1, limit=4
    $region2: #{tpu_custom_call.1} parent=1 // loop_pre_header
      _
    $region3: #{tpu_custom_call.1} parent=1 // loop_header
      %s15 = sphi 0, %s19
      %p16 = scmp.ge.s32.totalorder %s15, 4
      %s22 = sphi 0, %s34
      %s23 = sphi 0, %s30
      %s24 = sphi 0, %s22
      %s25 = sphi 0, %s23
      %s26 = sphi 0, %s24
      %s27 = sphi 0, %s25
      %s39 = sphi 0, %s41
      %s42 = sphi 0, %s39
      %s43 = sphi 0, %s42
      %s59 = sphi 0, %s43
      %s63 = sphi 0, %s63
      %s65 = sphi 0, %s63
      %s66 = sphi 0, %s65
      %s80 = sphi 0, %s66
      %s88 = sphi 0, %s90
      %s91 = sphi 0, %s88
      %s92 = sphi 0, %s91
      %s108 = sphi 0, %s92
    $region4: #{tpu_custom_call.1} parent=1 // loop_header_branch
      %18 = sbr.rel (%p16) target = $region8
    $region5: #{tpu_custom_call.1} parent=1 // loop_body
      %s20 = ssub.s32 %s15, 1
      %s21 = ssub.s32 %s15, 2
      %s28 = sadd.s32 1, %s23
      %p29 = scmp.ge.s32.totalorder %s28, 1
      %s30 = scalar_select %p29, 0, %s28
      %s31 = sadd.s32 1, %s22
      %s32 = scalar_select %p29, %s31, %s22
      %p33 = scmp.ge.s32.totalorder %s32, 2
      %s34 = scalar_select %p33, 0, %s32
      %s35 = ssub.s32 %s22, %s34
      %s36 = ssub.s32 %s23, %s30
      %s37 = sor.u32 %s35, %s36
      %p38 = scmp.eq.s32.totalorder %s37, 0
      %s40 = sadd.s32 %s39, 1
      %s41 = scalar_select %p38, %s39, %s40
      %p44 = pneg %p38
      %p45 = scmp.eq.s32.totalorder %s15, 1
      %p46 = por %p44, %p45
      %p47 = scmp.ne.s32.totalorder %s39, %s42
      %p48 = scmp.eq.s32.totalorder %s15, 0
      %p49 = por %p47, %p48
      %p50 = scmp.ne.s32.totalorder %s39, %s42
      %p51 = scmp.eq.s32.totalorder %s20, 1
      %p52 = por %p50, %p51
      %p53 = scmp.ne.s32.totalorder %s42, %s43
      %p54 = scmp.eq.s32.totalorder %s20, 0
      %p55 = por %p53, %p54
      %p56 = scmp.ne.s32.totalorder %s42, %s43
      %p57 = scmp.eq.s32.totalorder %s21, 1
      %p58 = por %p56, %p57
      %p60 = scmp.ne.s32.totalorder %s43, %s59
      %p61 = scmp.eq.s32.totalorder %s21, 0
      %p62 = por %p60, %p61
      %s64 = sadd.s32 %s63, 1
      %p67 = scmp.eq.s32.totalorder %s15, 1
      %p68 = scmp.ne.s32.totalorder %s63, %s65
      %p69 = scmp.eq.s32.totalorder %s15, 0
      %p70 = por %p68, %p69
      %p71 = scmp.ne.s32.totalorder %s63, %s65
      %p72 = scmp.eq.s32.totalorder %s20, 1
      %p73 = por %p71, %p72
      %p74 = scmp.ne.s32.totalorder %s65, %s66
      %p75 = scmp.eq.s32.totalorder %s20, 0
      %p76 = por %p74, %p75
      %p77 = scmp.ne.s32.totalorder %s65, %s66
      %p78 = scmp.eq.s32.totalorder %s21, 1
      %p79 = por %p77, %p78
      %p81 = scmp.ne.s32.totalorder %s66, %s80
      %p82 = scmp.eq.s32.totalorder %s21, 0
      %p83 = por %p81, %p82
      %s84 = ssub.s32 %s22, %s34
      %s85 = ssub.s32 %s23, %s30
      %s86 = sor.u32 %s84, %s85
      %p87 = scmp.eq.s32.totalorder %s86, 0
      %s89 = sadd.s32 %s88, 1
      %s90 = scalar_select %p87, %s88, %s89
      %p93 = pneg %p87
      %p94 = scmp.eq.s32.totalorder %s15, 1
      %p95 = por %p93, %p94
      %p96 = scmp.ne.s32.totalorder %s88, %s91
      %p97 = scmp.eq.s32.totalorder %s15, 0
      %p98 = por %p96, %p97
      %p99 = scmp.ne.s32.totalorder %s88, %s91
      %p100 = scmp.eq.s32.totalorder %s20, 1
      %p101 = por %p99, %p100
      %p102 = scmp.ne.s32.totalorder %s91, %s92
      %p103 = scmp.eq.s32.totalorder %s20, 0
      %p104 = por %p102, %p103
      %p105 = scmp.ne.s32.totalorder %s91, %s92
      %p106 = scmp.eq.s32.totalorder %s21, 1
      %p107 = por %p105, %p106
      %p109 = scmp.ne.s32.totalorder %s92, %s108
      %p110 = scmp.eq.s32.totalorder %s21, 0
      %p111 = por %p109, %p110
      %p112 = scmp.le.s32.totalorder 1, %s15
      %p113 = scmp.lt.s32.totalorder %s15, 3
      %p114 = pnand %p112, %p113
      %p115 = pneg %p114
      // Predicated region
      $region9: #{tpu_custom_call.1} parent=5 // pred_check
        _
      $region10: #{tpu_custom_call.1} parent=5 // pred_check_branch
        %117 = sbr.rel (%p114) target = $region12
      $region11: #{tpu_custom_call.1} parent=5 // pred_region
        %s118 = ssub.s32 %s15, 1
        // Predicated region
        $region13: #{tpu_custom_call.1} parent=11 // pred_check
          %p119 = pneg %p76
        $region14: #{tpu_custom_call.1} parent=11 // pred_check_branch
          %121 = sbr.rel (%p119) target = $region16
        $region15: #{tpu_custom_call.1} parent=11 // pred_region
          %123 = vsyncadd [#allocation6], 0
          %s124 = sshll.u32 %s1, 4
          %s125 = int_to_ptr.hbm [resolvable:$true] %s124
          %s126 = sshll.u32 [#allocation5], 4
          %s127 = int_to_ptr.vmem [resolvable:$true] %s126
          %132 = dma.hbm_to_vmem [thread:$0]  %s125, 256, %s127, [#allocation6], 128, 128, 8
        $region16: #{tpu_custom_call.1} parent=11 // pred_fallthru
          _
      $region12: #{tpu_custom_call.1} parent=5 // pred_fallthru
        _
      %p133 = scmp.lt.s32.totalorder %s15, 2
      // Predicated region
      $region17: #{tpu_custom_call.1} parent=5 // pred_check
        %p134 = pneg %p133
      $region18: #{tpu_custom_call.1} parent=5 // pred_check_branch
        %136 = sbr.rel (%p134) target = $region20
      $region19: #{tpu_custom_call.1} parent=5 // pred_region
        // Predicated region
        $region21: #{tpu_custom_call.1} parent=19 // pred_check
          %p137 = pneg %p49
        $region22: #{tpu_custom_call.1} parent=19 // pred_check_branch
          %139 = sbr.rel (%p137) target = $region24
        $region23: #{tpu_custom_call.1} parent=19 // pred_region
          %s140 = sand.u32 %s39, 1
          %s141 = scalar_lea.sflag [#allocation3], %s140
          %s142 = sand.u32 %s39, 1
          %s143 = scalar_lea.vmem [#allocation2], %s142
          %145 = vsyncadd %s141, 0
          %s146 = sadd.s32 %s23, %s22
          %s147 = scalar_lea.hbm %s0, %s146
          %s149 = sshll.u32 %s147, 4
          %s150 = int_to_ptr.hbm [resolvable:$true] %s149
          %s151 = sshll.u32 %s143, 4
          %s152 = int_to_ptr.vmem [resolvable:$true] %s151
          %154 = dma.hbm_to_vmem [thread:$0]  %s150, 16, %s152, %s141
        $region24: #{tpu_custom_call.1} parent=19 // pred_fallthru
          _
      $region20: #{tpu_custom_call.1} parent=5 // pred_fallthru
        _
      %p155 = scmp.le.s32.totalorder 1, %s15
      %p156 = scmp.lt.s32.totalorder %s15, 3
      %p157 = pnand %p155, %p156
      %p158 = pneg %p157
      // Predicated region
      $region25: #{tpu_custom_call.1} parent=5 // pred_check
        _
      $region26: #{tpu_custom_call.1} parent=5 // pred_check_branch
        %160 = sbr.rel (%p157) target = $region28
      $region27: #{tpu_custom_call.1} parent=5 // pred_region
        %s161 = ssub.s32 %s15, 1
        %s162 = sand.u32 %s42, 1
        %s163 = scalar_lea.sflag [#allocation3], %s162
        %s164 = sand.u32 %s42, 1
        %s165 = scalar_lea.vmem [#allocation2], %s164
        // Predicated region
        $region29: #{tpu_custom_call.1} parent=27 // pred_check
          %p166 = pneg %p55
        $region30: #{tpu_custom_call.1} parent=27 // pred_check_branch
          %168 = sbr.rel (%p166) target = $region32
        $region31: #{tpu_custom_call.1} parent=27 // pred_region
          %170 = dma.done %s163, 16
        $region32: #{tpu_custom_call.1} parent=27 // pred_fallthru
          _
        // Predicated region
        $region33: #{tpu_custom_call.1} parent=27 // pred_check
          %p171 = pneg %p76
        $region34: #{tpu_custom_call.1} parent=27 // pred_check_branch
          %173 = sbr.rel (%p171) target = $region36
        $region35: #{tpu_custom_call.1} parent=27 // pred_region
          %175 = dma.done [#allocation6], 256
        $region36: #{tpu_custom_call.1} parent=27 // pred_fallthru
          _
        %s176 = sand.u32 %s42, 1
        %s177 = scalar_lea.sflag [#allocation3], %s176
        %s178 = sand.u32 %s42, 1
        %s179 = scalar_lea.vmem [#allocation2], %s178
        %p180 = pneg %p55
        %p181 = pneg %p52
        %p182 = pneg %p76
        %p183 = pneg %p73
        %p184 = pneg %p104
        %p185 = pneg %p101
        %s186 = sand.u32 %s91, 1
        %s187 = scalar_lea.sflag [#allocation4], %s186
        %s188 = sand.u32 %s91, 1
        %s189 = smul.addr %s188, 16
        %s190 = scalar_lea.vmem [#allocation7], %s189
        %v191 = vld [vmem:[%s165] sm:$0x1]
        %v192 = vlaneseq
        %v193 = vshrl.u32 %v192, 7
        %v194 = vadd.s32 %v193, 8
        %v195 = vadd.s32 %v193, 16
        %v196 = vadd.s32 %v193, 24
        %v197 = vperm.slane %v191, 0
        %vm198 = vcmp.eq.s32.totalorder %v197, %v193
        %vm199 = vcmp.eq.s32.totalorder %v197, %v194
        %vm200 = vcmp.eq.s32.totalorder %v197, %v195
        %vm201 = vcmp.eq.s32.totalorder %v197, %v196
        %v202 = vsel %vm198, 1, 0
        %v203 = vsel %vm199, 1, 0
        %v204 = vsel %vm200, 1, 0
        %v205 = vsel %vm201, 1, 0
        %v206 = vcvt.s32.f32 %v202
        %v207 = vcvt.s32.f32 %v203
        %v208 = vcvt.s32.f32 %v204
        %v209 = vcvt.s32.f32 %v205
        %v210 = vld [vmem:[#allocation5] sm:$0xff]
        %v211 = vld [vmem:[#allocation5 + $0x8] sm:$0xff]
        %vm212 = vcmask 261120
        %v214 = vsel %vm212, %v210, 0
        %v217 = vsel %vm212, %v211, 0
        %219 = vmatpush.msra.mxu0 0.0
        %220 = vmatpush.msra.mxu0 0.0
        %221 = vmatpush.msra.mxu0 0.0
        %222 = vmatpush.msra.mxu0 0.0
        %223 = vmatpush.msra.mxu0 0.0
        %224 = vmatpush.msra.mxu0 0.0
        %225 = vmatpush.msra.mxu0 0.0
        %226 = vmatpush.msra.mxu0 0.0
        %227 = vmatpush.msra.mxu0 0.0
        %228 = vmatpush.msra.mxu0 0.0
        %229 = vmatpush.msra.mxu0 0.0
        %230 = vmatpush.msra.mxu0 0.0
        %231 = vmatpush.msra.mxu0 %v209
        %232 = vmatpush.msra.mxu0 %v208
        %233 = vmatpush.msra.mxu0 %v207
        %234 = vmatpush.msra.mxu0 %v206
        %235 = vmatmul.f32.gmra.mxu0 %v214
        %v236 = vpop.f32.mrf.mxu0
        %v237 = vadd.f32 0.0, %v236
        %238 = vmatmul.f32.gmra.mxu0 %v217
        %v239 = vpop.f32.mrf.mxu0
        %v240 = vadd.f32 0.0, %v239
        %241 = vdwg.mxu0
        %242 = vst [vmem:[%s190] sm:$0xff] %v237
        %243 = vst [vmem:[%s190 + $0x8] sm:$0xff] %v240
        %s244 = sand.u32 %s91, 1
        %s245 = scalar_lea.sflag [#allocation4], %s244
        %s246 = sand.u32 %s91, 1
        %s247 = smul.addr %s246, 16
        %s248 = scalar_lea.vmem [#allocation7], %s247
        // Predicated region
        $region37: #{tpu_custom_call.1} parent=27 // pred_check
          %p249 = pneg %p101
        $region38: #{tpu_custom_call.1} parent=27 // pred_check_branch
          %251 = sbr.rel (%p249) target = $region40
        $region39: #{tpu_custom_call.1} parent=27 // pred_region
          %253 = vsyncadd %s245, 0
          %s254 = smul.addr %s24, 2
          %s255 = sadd.s32 %s25, %s254
          %s256 = smul.addr %s255, 8
          %s257 = scalar_lea.hbm %s2, %s256
          %s258 = sshll.u32 %s248, 4
          %s259 = int_to_ptr.vmem [resolvable:$true] %s258
          %s260 = sshll.u32 %s257, 4
          %s261 = int_to_ptr.hbm [resolvable:$true] %s260
          %266 = dma.vmem_to_hbm [thread:$0]  %s259, 256, %s261, %s245, 128, 128, 8
        $region40: #{tpu_custom_call.1} parent=27 // pred_fallthru
          _
      $region28: #{tpu_custom_call.1} parent=5 // pred_fallthru
        _
      %p267 = scmp.le.s32.totalorder 2, %s15
      // Predicated region
      $region41: #{tpu_custom_call.1} parent=5 // pred_check
        %p268 = pneg %p267
      $region42: #{tpu_custom_call.1} parent=5 // pred_check_branch
        %270 = sbr.rel (%p268) target = $region44
      $region43: #{tpu_custom_call.1} parent=5 // pred_region
        %s271 = ssub.s32 %s15, 2
        // Predicated region
        $region45: #{tpu_custom_call.1} parent=43 // pred_check
          %p272 = pneg %p107
        $region46: #{tpu_custom_call.1} parent=43 // pred_check_branch
          %274 = sbr.rel (%p272) target = $region48
        $region47: #{tpu_custom_call.1} parent=43 // pred_region
          %s275 = sand.u32 %s92, 1
          %s276 = scalar_lea.sflag [#allocation4], %s275
          %s277 = sand.u32 %s92, 1
          %s278 = smul.addr %s277, 16
          %s279 = scalar_lea.vmem [#allocation7], %s278
          %281 = dma.done %s276, 256
        $region48: #{tpu_custom_call.1} parent=43 // pred_fallthru
          _
      $region44: #{tpu_custom_call.1} parent=5 // pred_fallthru
        _
    $region6: #{tpu_custom_call.1} parent=1 // loop_footer
      %s19 = sadd.s32 1, %s15
    $region7: #{tpu_custom_call.1} parent=1 // loop_footer_branch
      %14 = sbr.rel target = $region3
    $region8: #{tpu_custom_call.1} parent=1 // loop_exit
      _
    %282 = vsyncpa [#allocation3], 1
    %s283 = scalar_lea.sflag [#allocation3], 1
    %284 = vsyncpa %s283, 1
    %285 = vsyncpa [#allocation6], 1
    %286 = vsyncpa [#allocation4], 1
    %s287 = scalar_lea.sflag [#allocation4], 1
    %288 = vsyncpa %s287, 1

</llo_original>
